<compile_context>
chip_gen: v5e
topology: v5e:2x2
jax: 0.10.0
libtpu: 0.0.40
codegen_flags: <defaults>
</compile_context>

<pallas_src>
import functools

import jax
import jax.numpy as jnp
from jax.experimental import pallas as pl
from jax.experimental.pallas import tpu as pltpu


# ------------------------------- helpers ------------------------------------

def _round_up(n, m):
    return ((n + m - 1) // m) * m


_VMEM_LIMIT = 32 * 1024 * 1024          # comfortably under v7x's 64 MiB VMEM
_BLOCK_BYTES_TARGET = 2 * 1024 * 1024   # ~2 MiB/block -> ~4 MiB double-buffered


# ----------------------------- Pallas kernels -------------------------------

def _mean_rows_kernel(x_ref, o_ref, acc_ref, *, inv_count):
    """Row-wise mean; reduction tiled across grid axis 1 (the K axis).

    x_ref: (tm, tk) block, acc_ref: (tm, 1) f32 scratch, o_ref: (tm, 1).
    """
    k = pl.program_id(1)

    @pl.when(k == 0)
    def _init():
        acc_ref[...] = jnp.zeros_like(acc_ref)

    x = x_ref[...].astype(jnp.float32)
    acc_ref[...] += jnp.sum(x, axis=-1, keepdims=True)

    @pl.when(k == pl.num_programs(1) - 1)
    def _finalize():
        o_ref[...] = (acc_ref[...] * inv_count).astype(o_ref.dtype)


def _mean_all_kernel(x_ref, o_ref, acc_ref, *, inv_count):
    """Full mean of a 2D (rows, C) array; grid over row blocks.

    x_ref: (tr, C) block, acc_ref: (1, C) f32 per-lane partial sums,
    o_ref: (1, 1).
    """
    i = pl.program_id(0)

    @pl.when(i == 0)
    def _init():
        acc_ref[...] = jnp.zeros_like(acc_ref)

    x = x_ref[...].astype(jnp.float32)
    acc_ref[...] += jnp.sum(x, axis=0, keepdims=True)

    @pl.when(i == pl.num_programs(0) - 1)
    def _finalize():
        total = jnp.sum(acc_ref[...], axis=-1, keepdims=True)   # (1, 1)
        o_ref[...] = (total * inv_count).astype(o_ref.dtype)


# ------------------------------- wrappers ------------------------------------

def _mean_last_axis(x2d, out_dtype):
    """x2d: (outer, red). Returns (outer,) mean over the last axis."""
    outer, red = x2d.shape
    bpe = jnp.dtype(x2d.dtype).itemsize

    # Lane (reduction) tile: multiple of 128, capped; zero-pad `red` to a
    # multiple of it (zeros don't affect the sum; we divide by the true red).
    tk = min(_round_up(red, 128), 4096)
    red_pad = _round_up(red, tk)

    # Row tile: as many rows as fit the per-block budget, multiple of 8,
    # capped at 1024 so large `outer` keeps >= 2 blocks for megacore.
    tm = min(1024,
             max(8, (_BLOCK_BYTES_TARGET // (tk * bpe)) // 8 * 8),
             _round_up(outer, 8))
    outer_pad = _round_up(outer, tm)

    if (outer_pad, red_pad) != (outer, red):
        x2d = jnp.pad(x2d, ((0, outer_pad - outer), (0, red_pad - red)))

    grid = (outer_pad // tm, red_pad // tk)
    out = pl.pallas_call(
        functools.partial(_mean_rows_kernel, inv_count=1.0 / red),
        out_shape=jax.ShapeDtypeStruct((outer_pad, 1), out_dtype),
        grid=grid,
        in_specs=[pl.BlockSpec((tm, tk), lambda i, k: (i, k))],
        out_specs=pl.BlockSpec((tm, 1), lambda i, k: (i, 0)),
        scratch_shapes=[pltpu.VMEM((tm, 1), jnp.float32)],
        compiler_params=pltpu.CompilerParams(
            dimension_semantics=("parallel", "arbitrary"),
            vmem_limit_bytes=_VMEM_LIMIT),
    )(x2d)
    return out[:outer, 0]


def _mean_full(x, out_dtype):
    """Mean of all elements of x; returns a 0-d array."""
    n = x.size
    flat = x.reshape(-1)

    cols = 512                                   # lane-dense, multiple of 128
    rows = pl.cdiv(n, cols)
    tr = min(1024, _round_up(rows, 8))           # row tile, multiple of 8
    rows_pad = _round_up(rows, tr)
    n_pad = rows_pad * cols
    if n_pad != n:
        flat = jnp.pad(flat, (0, n_pad - n))     # zeros don't affect the sum
    x2d = flat.reshape(rows_pad, cols)

    out = pl.pallas_call(
        functools.partial(_mean_all_kernel, inv_count=1.0 / n),
        out_shape=jax.ShapeDtypeStruct((1, 1), out_dtype),
        grid=(rows_pad // tr,),
        in_specs=[pl.BlockSpec((tr, cols), lambda i: (i, 0))],
        out_specs=pl.BlockSpec((1, 1), lambda i: (0, 0)),
        scratch_shapes=[pltpu.VMEM((1, cols), jnp.float32)],
        compiler_params=pltpu.CompilerParams(
            dimension_semantics=("arbitrary",),
            vmem_limit_bytes=_VMEM_LIMIT),
    )(x2d)
    return out[0, 0]


@functools.partial(jax.jit, static_argnames=("dim", "keepdim", "dtype"))
def mean_model_forward(x, dim=None, keepdim=False, dtype=jnp.float32):
    """JAX/Pallas equivalent of torch.mean(x, dim, keepdim, dtype=dtype).

    NOTE: torch casts the input to `dtype` before reducing; we keep the input
    dtype through the DMA and accumulate in float32 (equal for f32, slightly
    more accurate when a bf16/fp16 dtype is requested).
    """
    ndim = x.ndim
    shape = x.shape

    if dim is None:
        # torch.mean(x, dtype=dtype): full reduction to a 0-d tensor.
        return _mean_full(x, dtype)

    dims = (dim,) if isinstance(dim, int) else tuple(dim)
    dims = tuple(sorted(d % ndim for d in dims))
    keep = tuple(d for d in range(ndim) if d not in dims)

    if keepdim:
        out_shape = tuple(1 if d in dims else shape[d] for d in range(ndim))
    else:
        out_shape = tuple(shape[d] for d in keep)

    if not keep:  # reducing every axis -> use the full-reduction path
        return _mean_full(x, dtype).reshape(out_shape)

    perm = keep + dims
    if perm != tuple(range(ndim)):
        # TODO(synk): fold non-trailing reduce axes into the BlockSpec
        # index_map instead of paying an extra HBM pass for this transpose.
        x = jnp.transpose(x, perm)

    outer = 1
    for d in keep:
        outer *= shape[d]
    red = 1
    for d in dims:
        red *= shape[d]
    x2d = x.reshape(outer, red)

    means = _mean_last_axis(x2d, dtype)  # (outer,)
    return means.reshape(out_shape)


# --------------------------------- main ---------------------------------------

if __name__ == "__main__":
    key = jax.random.PRNGKey(0)
    x = jax.random.normal(key, (2, 4, 16, 16), dtype=jnp.float32)

    # Config mirroring mean_model(dim=[2, 3], dtype=torch.float32, keepdim=True)
    dim = (2, 3)
    keepdim = True
    out_dtype = jnp.float32

    out = mean_model_forward(x, dim=dim, keepdim=keepdim, dtype=out_dtype)
    out = jax.block_until_ready(out)
    ref = jnp.mean(x, axis=dim, keepdims=keepdim).astype(out_dtype)
    assert out.shape == ref.shape and out.dtype == ref.dtype
    assert jnp.allclose(out, ref, atol=1e-5, rtol=1e-5)

    # Also exercise the dim=None (full reduction) path of the module.
    out_full = mean_model_forward(x, dim=None, dtype=out_dtype)
    out_full = jax.block_until_ready(out_full)
    assert out_full.shape == () and out_full.dtype == out_dtype
    assert jnp.allclose(out_full, jnp.mean(x), atol=1e-5, rtol=1e-5)

    print("KERNEL_OK")
</pallas_src>

<mosaic_0001>
module attributes {stable_mosaic.version = 11 : i64} {
  func.func @_mean_rows_kernel(%arg0: i32, %arg1: i32, %arg2: memref<8x256xf32, #tpu.memory_space<vmem>>, %arg3: memref<8x1xf32, #tpu.memory_space<vmem>>, %arg4: memref<8x1xf32, #tpu.memory_space<vmem>>) attributes {dimension_semantics = [#tpu.dimension_semantics<parallel>, #tpu.dimension_semantics<arbitrary>], iteration_bounds = array<i64: 1, 1>, scalar_prefetch = 0 : i64, scratch_operands = 1 : i64, tpu.core_type = #tpu.core_type<tc>, window_params = [{transform_indices = @transform_0, window_bounds = array<i64: 8, 256>}, {transform_indices = @transform_1, window_bounds = array<i64: 8, 1>}]} {
    %c0_i32 = arith.constant 0 : i32
    %0 = arith.cmpi eq, %arg1, %c0_i32 : i32
    %1 = arith.extui %0 : i1 to i32
    %c0_i32_0 = arith.constant 0 : i32
    %2 = arith.cmpi ne, %1, %c0_i32_0 : i32
    scf.if %2 {
      %cst_8 = arith.constant 0.000000e+00 : f32
      %12 = vector.broadcast %cst_8 : f32 to vector<8x1xf32>
      %c0_9 = arith.constant 0 : index
      %c0_10 = arith.constant 0 : index
      %13 = vector.load %arg4[%c0_9, %c0_10] : memref<8x1xf32, #tpu.memory_space<vmem>>, vector<8x1xf32>
      tpu.vector_store %arg4[%c0_9, %c0_10], %12 {strides = array<i32>} : memref<8x1xf32, #tpu.memory_space<vmem>>, vector<8x1xf32>,
    } else {
    }
    %c0 = arith.constant 0 : index
    %c0_1 = arith.constant 0 : index
    %3 = vector.load %arg2[%c0, %c0_1] : memref<8x256xf32, #tpu.memory_space<vmem>>, vector<8x256xf32>
    %c0_2 = arith.constant 0 : index
    %c0_3 = arith.constant 0 : index
    %4 = vector.load %arg4[%c0_2, %c0_3] : memref<8x1xf32, #tpu.memory_space<vmem>>, vector<8x1xf32>
    %cst = arith.constant dense<0.000000e+00> : vector<8xf32>
    %5 = vector.multi_reduction <add>, %3, %cst [1] : vector<8x256xf32> to vector<8xf32>
    %6 = vector.shape_cast %5 : vector<8xf32> to vector<8x1xf32>
    %7 = arith.addf %4, %6 : vector<8x1xf32>
    %c0_4 = arith.constant 0 : index
    %c0_5 = arith.constant 0 : index
    %8 = vector.load %arg4[%c0_4, %c0_5] : memref<8x1xf32, #tpu.memory_space<vmem>>, vector<8x1xf32>
    tpu.vector_store %arg4[%c0_4, %c0_5], %7 {strides = array<i32>} : memref<8x1xf32, #tpu.memory_space<vmem>>, vector<8x1xf32>,
    %c0_i32_6 = arith.constant 0 : i32
    %9 = arith.cmpi eq, %arg1, %c0_i32_6 : i32
    %10 = arith.extui %9 : i1 to i32
    %c0_i32_7 = arith.constant 0 : i32
    %11 = arith.cmpi ne, %10, %c0_i32_7 : i32
    scf.if %11 {
      %c0_8 = arith.constant 0 : index
      %c0_9 = arith.constant 0 : index
      %12 = vector.load %arg4[%c0_8, %c0_9] : memref<8x1xf32, #tpu.memory_space<vmem>>, vector<8x1xf32>
      %cst_10 = arith.constant 3.906250e-03 : f32
      %13 = vector.broadcast %cst_10 : f32 to vector<8x1xf32>
      %14 = arith.mulf %12, %13 : vector<8x1xf32>
      %c0_11 = arith.constant 0 : index
      %c0_12 = arith.constant 0 : index
      %15 = vector.load %arg3[%c0_11, %c0_12] : memref<8x1xf32, #tpu.memory_space<vmem>>, vector<8x1xf32>
      tpu.vector_store %arg3[%c0_11, %c0_12], %14 {strides = array<i32>} : memref<8x1xf32, #tpu.memory_space<vmem>>, vector<8x1xf32>,
    } else {
    }
    return
  }
  func.func @transform_0(%arg0: i32, %arg1: i32) -> (i32, i32) {
    %c0_i32 = arith.constant 0 : i32
    return %arg0, %arg1 : i32, i32
  }
  func.func @transform_1(%arg0: i32, %arg1: i32) -> (i32, i32) {
    %c0_i32 = arith.constant 0 : i32
    %c0_i32_0 = arith.constant 0 : i32
    return %arg0, %c0_i32 : i32, i32
  }
}

</mosaic_0001>

<llo_original>
// kernel: squeeze.1
$region0: #{squeeze.1}
  %s0 = inlined_call_operand.vmem [shape: f32[8], index: 0, kind: input, shape index: {}]
  %s1 = inlined_call_operand.hbm [shape: f32[2,4,1,1], index: 1, kind: output, shape index: {}]
  $region1: #{squeeze.1} parent=0
    #allocation0 [shape = 'u8[1024]{0}', space=vmem, size = 0x400, scoped, tag = 'operand span for operand 1']
    #allocation1 [shape = 's32[1]{0}', space=sflag, size = 0x4, scoped, tag = 'scoped memory for squeeze.1']
    #allocation2 [shape = 'u8[4096]{0}', space=vmem, size = 0x1000, scoped, tag = 'scoped mem for output reshape']
    #allocation3 [shape = 'u8[4096]{0}', space=vmem, size = 0x1000, scoped, tag = 'scoped mem for input reshape']
    %2 = vsyncpa [#allocation1], 0
    %s4 = ssub.s32 2, 1
    %v5 = vld [vmem:[%s0] sm:%s4]
    %6 = vst [vmem:[#allocation3] sm:%s4] %v5
    %v7 = vld [vmem:[#allocation3] sm:$0x1]
    %vm8 = vcmask 31744
    %9 = vst.msk [vmem:[#allocation2] sm:$0x1] %vm8, %v7
    %v10 = vld [vmem:[#allocation3] sm:$0x1]
    %11 = vrot.lane.b32.xlu0 %v10, 124
    %v12 = vpop.permute.xlu0 %11
    %vm13 = vcmask 31744
    %s14 = scalar_lea.vmem [#allocation2], 1
    %15 = vst.msk [vmem:[%s14] sm:$0x1] %vm13, %v12
    %s17 = ssub.s32 4, 1
    %v18 = vld [vmem:[#allocation2] sm:%s17]
    %s20 = ssub.s32 4, 1
    %21 = vst [vmem:[#allocation0] sm:%s20] %v18
    %23 = vsyncadd [#allocation1], 0
    %s25 = sshll.u32 [#allocation0], 4
    %s26 = int_to_ptr.vmem [resolvable:$true] %s25
    %s27 = sshll.u32 %s1, 4
    %s28 = int_to_ptr.hbm [resolvable:$true] %s27
    %30 = dma.vmem_to_hbm [thread:$0]  %s26, 32, %s28, [#allocation1]
    %32 = dma.done [#allocation1], 32
    %33 = vsyncpa [#allocation1], 1

// kernel: mean_model_forward.1
$region0: #{mean_model_forward.1}
  #allocation0 [shape = 'u32[]', space=smem, size = 0x4, offset = 0x4, fixed_abs, tag = 'smem constant byte address 0x4 - core index']
  #allocation1 [shape = 'u32[72,128]{1,0:T(1,128)}', space=vmem, size = 0x9000, scoped, tag = 'internal scratch']
  #allocation2 [shape = 'f32[8,1]{1,0:T(8,128)}', space=vmem, size = 0x1000, scoped, tag = 'scratch operand']
  %s0 = inlined_call_operand.vmem [shape: f32[8,256], index: 0, kind: input, shape index: {}]
  %s1 = inlined_call_operand.vmem [shape: f32[8,1], index: 1, kind: output, shape index: {}]
  %s2 = sld [smem:[#allocation0]]
  $region22: #{mean_model_forward.1} parent=0
    _
  %s4 = ssub.s32 1, %s2
  %s5 = scalar_select 0, %s4, %s2
  // Predicated region
  $region2: #{mean_model_forward.1} parent=0 // pred_check
    _
  $region3: #{mean_model_forward.1} parent=0 // pred_check_branch
    %7 = sbr.rel (0) target = $region5
  $region4: #{mean_model_forward.1} parent=0 // pred_region
    _
  $region5: #{mean_model_forward.1} parent=0 // pred_fallthru
    _
  %p8 = scmp.eq.s32.totalorder 0, 0
  // Predicated region
  $region6: #{mean_model_forward.1} parent=0 // pred_check
    %p9 = pneg %p8
  $region7: #{mean_model_forward.1} parent=0 // pred_check_branch
    %11 = sbr.rel (%p9) target = $region9
  $region8: #{mean_model_forward.1} parent=0 // pred_region
    %vm12 = vcmask 7168
    %13 = vst.msk [vmem:[#allocation2] sm:$0xff] %vm12, 0.0
  $region9: #{mean_model_forward.1} parent=0 // pred_fallthru
    _
  %v14 = vld [vmem:[%s0] sm:$0xff]
  %v15 = vld [vmem:[%s0 + $0x8] sm:$0xff]
  %v16 = vld [vmem:[#allocation2] sm:$0xff]
  %v17 = vadd.f32 %v14, %v15
  %18 = vadd.xlane.f32.xlu0 %v17
  %v19 = vpop.xlane.xlu0 %18
  %v20 = vadd.f32 %v16, %v19
  %vm21 = vcmask 7168
  %22 = vst.msk [vmem:[#allocation2] sm:$0xff] %vm21, %v20
  // Predicated region
  $region10: #{mean_model_forward.1} parent=0 // pred_check
    %p23 = pneg %p8
  $region11: #{mean_model_forward.1} parent=0 // pred_check_branch
    %25 = sbr.rel (%p23) target = $region13
  $region12: #{mean_model_forward.1} parent=0 // pred_region
    %v26 = vld [vmem:[#allocation2] sm:$0xff]
    %v27 = vmul.f32 %v26, 0.00390625
    %28 = vst.msk [vmem:[%s1] sm:$0xff] %vm21, %v27
  $region13: #{mean_model_forward.1} parent=0 // pred_fallthru
    _
  // Predicated region
  $region14: #{mean_model_forward.1} parent=0 // pred_check
    _
  $region15: #{mean_model_forward.1} parent=0 // pred_check_branch
    %30 = sbr.rel (0) target = $region17
  $region16: #{mean_model_forward.1} parent=0 // pred_region
    _
  $region17: #{mean_model_forward.1} parent=0 // pred_fallthru
    _
  // Predicated region
  $region18: #{mean_model_forward.1} parent=0 // pred_check
    _
  $region19: #{mean_model_forward.1} parent=0 // pred_check_branch
    %32 = sbr.rel (0) target = $region21
  $region20: #{mean_model_forward.1} parent=0 // pred_region
    _
  $region21: #{mean_model_forward.1} parent=0 // pred_fallthru
    _

</llo_original>
